<compile_context>
chip_gen: v6e
topology: v6e:2x2x1
jax: 0.10.0
libtpu: 0.0.40
codegen_flags: <defaults>
</compile_context>

<pallas_src>
import jax
import jax.numpy as jnp
from jax import lax
from jax.experimental import pallas as pl
from jax.experimental.pallas import tpu as pltpu


def _round_up(x, m):
    return (x + m - 1) // m * m


def rnn_classify_kernel(tok_ref, emb_wih_ref, whh_ref, b_ref, wcls_ref, bcls_ref, out_ref):
    # tok_ref:     (L*Bp, 1)  int32 token ids, TIME-MAJOR (t fastest-varying over rows of Bp)
    # emb_wih_ref: (Vp, Dp)   bf16  E @ W_ih^T   (embedding fused with input projection)
    # whh_ref:     (Dp, Dp)   bf16  W_hh^T       (zero-padded)
    # b_ref:       (1, Dp)    f32   b_ih + b_hh  (zero-padded)
    # wcls_ref:    (Dp, Cp)   bf16  W_classify^T (zero-padded)
    # bcls_ref:    (1, Cp)    f32   b_classify   (-1e30 in padded class lanes)
    # out_ref:     (Bp, Cp)   f32   softmax probabilities (lane-dense)
    LBp = tok_ref.shape[0]
    Vp, Dp = emb_wih_ref.shape
    Bp = out_ref.shape[0]
    L = LBp // Bp

    # --- embedding gather + x_t @ W_ih^T + bias for ALL timesteps: one MXU matmul ---
    tok = tok_ref[...]                                                    # (L*Bp, 1) i32
    vocab_iota = lax.broadcasted_iota(jnp.int32, (LBp, Vp), 1)
    onehot = (tok == vocab_iota).astype(jnp.bfloat16)                     # (L*Bp, Vp) bf16
    pre = jnp.dot(onehot, emb_wih_ref[...],
                  preferred_element_type=jnp.float32) + b_ref[...]        # (L*Bp, Dp) f32
    pre = pre.reshape(L, Bp, Dp)                                          # each pre[t] = one (8,128) slab

    # --- serial tanh recurrence: only h @ W_hh^T remains on the critical path ---
    # PyTorch nn.RNN: h_t = tanh(x_t W_ih^T + b_ih + h_{t-1} W_hh^T + b_hh), h_0 = 0
    whh = whh_ref[...]                                                    # bf16, loaded once
    h = jnp.zeros((Bp, Dp), jnp.float32)
    for t in range(L):  # L is small & static -> full unroll (switch to lax.fori_loop if L grows)
        h = jnp.tanh(pre[t] +
                     jnp.dot(h.astype(jnp.bfloat16), whh,
                             preferred_element_type=jnp.float32))

    # --- classify last hidden state + softmax over the (padded, lane-dense) classes ---
    logits = jnp.dot(h.astype(jnp.bfloat16), wcls_ref[...],
                     preferred_element_type=jnp.float32) + bcls_ref[...]  # (Bp, Cp) f32
    m = jnp.max(logits, axis=1, keepdims=True)
    e = jnp.exp(logits - m)                       # padded classes -> exp(-1e30 - m) == 0 in f32
    out_ref[...] = e * pl.reciprocal(jnp.sum(e, axis=1, keepdims=True), approx=True)


def prepare_params(raw):
    """One-time preprocessing: transpose / pad / fuse weights into kernel layout."""
    emb = raw["embedding"].astype(jnp.float32)           # (V, D)
    V, D = emb.shape
    C = raw["b_cls"].shape[-1]

    Dp = _round_up(D, 128)                               # lane-dense hidden dim
    Vp = _round_up(V, 128)                               # lane-dense one-hot / K dim
    Cp = _round_up(C, 128)                               # lane-dense class dim

    # Fuse embedding lookup with the input projection (row-wise exact):
    #   (one_hot(tok) @ (E @ W_ih^T))[i] == E[tok_i] @ W_ih^T
    emb_wih = emb @ raw["w_ih"].T                        # (V, D), computed in f32
    emb_wih = (jnp.zeros((Vp, Dp), jnp.float32).at[:V, :D].set(emb_wih)
               ).astype(jnp.bfloat16)

    whh_t = (jnp.zeros((Dp, Dp), jnp.float32).at[:D, :D].set(raw["w_hh"].T)
             ).astype(jnp.bfloat16)
    b_rnn = jnp.zeros((1, Dp), jnp.float32).at[0, :D].set(raw["b_ih"] + raw["b_hh"])

    wcls_t = (jnp.zeros((Dp, Cp), jnp.float32).at[:D, :C].set(raw["w_cls"].T)
              ).astype(jnp.bfloat16)
    bcls = jnp.full((1, Cp), -1e30, jnp.float32).at[0, :C].set(raw["b_cls"])  # stays f32!

    prep = {"emb_wih": emb_wih, "whh_t": whh_t, "b_rnn": b_rnn,
            "wcls_t": wcls_t, "bcls": bcls}
    dims = (V, D, C, Vp, Dp, Cp)
    return prep, dims


def rnn_model_forward(tokens, prep, dims):
    """Equivalent of RNNModel.forward(x) with y=None -> softmax probs of shape (B, C).

    Call under jax.jit so padding + pallas_call + output slice fuse into one dispatch.
    """
    V, D, C, Vp, Dp, Cp = dims
    B, L = tokens.shape
    Bp = _round_up(max(B, 8), 8)                         # full sublane tile

    # Pad batch to a full sublane tile; padded rows read token 0 and are sliced off below.
    # TIME-MAJOR flatten: row block t holds all Bp sequences' tokens at time t.
    tok_pad = jnp.zeros((Bp, L), jnp.int32).at[:B, :].set(tokens.astype(jnp.int32))
    tok_flat = tok_pad.T.reshape(L * Bp, 1)

    vmem = pl.BlockSpec(memory_space=pltpu.MemorySpace.VMEM)
    out = pl.pallas_call(
        rnn_classify_kernel,
        out_shape=jax.ShapeDtypeStruct((Bp, Cp), jnp.float32),
        in_specs=[vmem] * 6,
        out_specs=vmem,
    )(tok_flat, prep["emb_wih"], prep["whh_t"], prep["b_rnn"],
      prep["wcls_t"], prep["bcls"])

    # TODO(synk): if vocab / hidden dims grow toward the v7x 64 MiB VMEM budget, tile the
    #             fused embedding matmul over a vocab grid axis instead of whole-array VMEM.
    return out[:B, :C]


def init_params(key, vocab_size, vector_dim, sentence_length):
    """Raw PyTorch-layout parameters (as nn.Embedding / nn.RNN / nn.Linear store them)."""
    D = vector_dim
    C = sentence_length + 1
    ks = jax.random.split(key, 7)
    scale = 0.1
    return {
        "embedding": jax.random.normal(ks[0], (vocab_size, D), jnp.float32) * scale,
        "w_ih": jax.random.normal(ks[1], (D, D), jnp.float32) * scale,
        "w_hh": jax.random.normal(ks[2], (D, D), jnp.float32) * scale,
        "b_ih": jax.random.normal(ks[3], (D,), jnp.float32) * scale,
        "b_hh": jax.random.normal(ks[4], (D,), jnp.float32) * scale,
        "w_cls": jax.random.normal(ks[5], (C, D), jnp.float32) * scale,
        "b_cls": jax.random.normal(ks[6], (C,), jnp.float32) * scale,
    }


if __name__ == "__main__":
    key = jax.random.PRNGKey(0)
    vocab_size = 27          # e.g. 'a'-'z' + unk
    vector_dim = 32
    sentence_length = 8
    batch = 2

    pkey, tkey = jax.random.split(key)
    raw = init_params(pkey, vocab_size, vector_dim, sentence_length)
    prep, dims = prepare_params(raw)
    tokens = jax.random.randint(tkey, (batch, sentence_length), 0, vocab_size, jnp.int32)

    # One jit over the whole wrapper: pad + pallas_call + slice -> single dispatch.
    forward = jax.jit(lambda toks: rnn_model_forward(toks, prep, dims))

    probs = jax.block_until_ready(forward(tokens))

    # Pure-JAX f32 reference mirroring the PyTorch forward (inference path).
    def reference(tokens, raw):
        x = raw["embedding"][tokens]                                 # (B, L, D)
        h = jnp.zeros((tokens.shape[0], vector_dim), jnp.float32)
        for t in range(sentence_length):
            h = jnp.tanh(x[:, t, :] @ raw["w_ih"].T + raw["b_ih"]
                         + h @ raw["w_hh"].T + raw["b_hh"])
        logits = h @ raw["w_cls"].T + raw["b_cls"]
        return jax.nn.softmax(logits, axis=1)

    ref = reference(tokens, raw)

    assert probs.shape == (batch, sentence_length + 1)
    assert jnp.allclose(jnp.sum(probs, axis=1), 1.0, atol=5e-3)
    assert jnp.allclose(probs, ref, atol=5e-3)
    print("KERNEL_OK")
</pallas_src>

<mosaic_0001>
module attributes {stable_mosaic.version = 11 : i64} {
  func.func @rnn_classify_kernel(%arg0: memref<64x1xi32, #tpu.memory_space<vmem>>, %arg1: memref<128x128xbf16, #tpu.memory_space<vmem>>, %arg2: memref<128x128xbf16, #tpu.memory_space<vmem>>, %arg3: memref<1x128xf32, #tpu.memory_space<vmem>>, %arg4: memref<128x128xbf16, #tpu.memory_space<vmem>>, %arg5: memref<1x128xf32, #tpu.memory_space<vmem>>, %arg6: memref<8x128xf32, #tpu.memory_space<vmem>>) attributes {dimension_semantics = [], scalar_prefetch = 0 : i64, scratch_operands = 0 : i64, tpu.core_type = #tpu.core_type<tc>} {
    %c0 = arith.constant 0 : index
    %c0_0 = arith.constant 0 : index
    %0 = vector.load %arg0[%c0, %c0_0] : memref<64x1xi32, #tpu.memory_space<vmem>>, vector<64x1xi32>
    %1 = tpu.iota {dimensions = array<i32: 1>} : vector<64x128xi32>
    %2 = vector.broadcast %0 : vector<64x1xi32> to vector<64x128xi32>
    %3 = arith.cmpi eq, %2, %1 : vector<64x128xi32>
    %4 = arith.extui %3 : vector<64x128xi1> to vector<64x128xi32>
    %5 = arith.sitofp %4 : vector<64x128xi32> to vector<64x128xf32>
    %6 = arith.truncf %5 : vector<64x128xf32> to vector<64x128xbf16>
    %c0_1 = arith.constant 0 : index
    %c0_2 = arith.constant 0 : index
    %7 = vector.load %arg1[%c0_1, %c0_2] : memref<128x128xbf16, #tpu.memory_space<vmem>>, vector<128x128xbf16>
    %cst = arith.constant dense<0.000000e+00> : vector<64x128xf32>
    %8 = tpu.matmul %6, %7, %cst {dimension_numbers = #tpu.dot_dimension_numbers<[1], [0], [0], [1], [0, 0, 1, 1], [], []>} : vector<64x128xbf16>, vector<128x128xbf16>, vector<64x128xf32> -> vector<64x128xf32>
    %c0_3 = arith.constant 0 : index
    %c0_4 = arith.constant 0 : index
    %9 = vector.load %arg3[%c0_3, %c0_4] : memref<1x128xf32, #tpu.memory_space<vmem>>, vector<1x128xf32>
    %10 = vector.broadcast %9 : vector<1x128xf32> to vector<64x128xf32>
    %11 = arith.addf %8, %10 : vector<64x128xf32>
    %12 = vector.shape_cast %11 : vector<64x128xf32> to vector<8x8x128xf32>
    %c0_5 = arith.constant 0 : index
    %c0_6 = arith.constant 0 : index
    %13 = vector.load %arg2[%c0_5, %c0_6] : memref<128x128xbf16, #tpu.memory_space<vmem>>, vector<128x128xbf16>
    %cst_7 = arith.constant 0.000000e+00 : f32
    %14 = vector.broadcast %cst_7 : f32 to vector<8x128xf32>
    %15 = vector.extract_strided_slice %12 {offsets = [0, 0, 0], sizes = [1, 8, 128], strides = [1, 1, 1]} : vector<8x8x128xf32> to vector<1x8x128xf32>
    %16 = vector.shape_cast %15 : vector<1x8x128xf32> to vector<8x128xf32>
    %17 = arith.truncf %14 : vector<8x128xf32> to vector<8x128xbf16>
    %cst_8 = arith.constant dense<0.000000e+00> : vector<8x128xf32>
    %18 = tpu.matmul %17, %13, %cst_8 {dimension_numbers = #tpu.dot_dimension_numbers<[1], [0], [0], [1], [0, 0, 1, 1], [], []>} : vector<8x128xbf16>, vector<128x128xbf16>, vector<8x128xf32> -> vector<8x128xf32>
    %19 = arith.addf %16, %18 : vector<8x128xf32>
    %20 = math.tanh %19 : vector<8x128xf32>
    %21 = vector.extract_strided_slice %12 {offsets = [1, 0, 0], sizes = [1, 8, 128], strides = [1, 1, 1]} : vector<8x8x128xf32> to vector<1x8x128xf32>
    %22 = vector.shape_cast %21 : vector<1x8x128xf32> to vector<8x128xf32>
    %23 = arith.truncf %20 : vector<8x128xf32> to vector<8x128xbf16>
    %cst_9 = arith.constant dense<0.000000e+00> : vector<8x128xf32>
    %24 = tpu.matmul %23, %13, %cst_9 {dimension_numbers = #tpu.dot_dimension_numbers<[1], [0], [0], [1], [0, 0, 1, 1], [], []>} : vector<8x128xbf16>, vector<128x128xbf16>, vector<8x128xf32> -> vector<8x128xf32>
    %25 = arith.addf %22, %24 : vector<8x128xf32>
    %26 = math.tanh %25 : vector<8x128xf32>
    %27 = vector.extract_strided_slice %12 {offsets = [2, 0, 0], sizes = [1, 8, 128], strides = [1, 1, 1]} : vector<8x8x128xf32> to vector<1x8x128xf32>
    %28 = vector.shape_cast %27 : vector<1x8x128xf32> to vector<8x128xf32>
    %29 = arith.truncf %26 : vector<8x128xf32> to vector<8x128xbf16>
    %cst_10 = arith.constant dense<0.000000e+00> : vector<8x128xf32>
    %30 = tpu.matmul %29, %13, %cst_10 {dimension_numbers = #tpu.dot_dimension_numbers<[1], [0], [0], [1], [0, 0, 1, 1], [], []>} : vector<8x128xbf16>, vector<128x128xbf16>, vector<8x128xf32> -> vector<8x128xf32>
    %31 = arith.addf %28, %30 : vector<8x128xf32>
    %32 = math.tanh %31 : vector<8x128xf32>
    %33 = vector.extract_strided_slice %12 {offsets = [3, 0, 0], sizes = [1, 8, 128], strides = [1, 1, 1]} : vector<8x8x128xf32> to vector<1x8x128xf32>
    %34 = vector.shape_cast %33 : vector<1x8x128xf32> to vector<8x128xf32>
    %35 = arith.truncf %32 : vector<8x128xf32> to vector<8x128xbf16>
    %cst_11 = arith.constant dense<0.000000e+00> : vector<8x128xf32>
    %36 = tpu.matmul %35, %13, %cst_11 {dimension_numbers = #tpu.dot_dimension_numbers<[1], [0], [0], [1], [0, 0, 1, 1], [], []>} : vector<8x128xbf16>, vector<128x128xbf16>, vector<8x128xf32> -> vector<8x128xf32>
    %37 = arith.addf %34, %36 : vector<8x128xf32>
    %38 = math.tanh %37 : vector<8x128xf32>
    %39 = vector.extract_strided_slice %12 {offsets = [4, 0, 0], sizes = [1, 8, 128], strides = [1, 1, 1]} : vector<8x8x128xf32> to vector<1x8x128xf32>
    %40 = vector.shape_cast %39 : vector<1x8x128xf32> to vector<8x128xf32>
    %41 = arith.truncf %38 : vector<8x128xf32> to vector<8x128xbf16>
    %cst_12 = arith.constant dense<0.000000e+00> : vector<8x128xf32>
    %42 = tpu.matmul %41, %13, %cst_12 {dimension_numbers = #tpu.dot_dimension_numbers<[1], [0], [0], [1], [0, 0, 1, 1], [], []>} : vector<8x128xbf16>, vector<128x128xbf16>, vector<8x128xf32> -> vector<8x128xf32>
    %43 = arith.addf %40, %42 : vector<8x128xf32>
    %44 = math.tanh %43 : vector<8x128xf32>
    %45 = vector.extract_strided_slice %12 {offsets = [5, 0, 0], sizes = [1, 8, 128], strides = [1, 1, 1]} : vector<8x8x128xf32> to vector<1x8x128xf32>
    %46 = vector.shape_cast %45 : vector<1x8x128xf32> to vector<8x128xf32>
    %47 = arith.truncf %44 : vector<8x128xf32> to vector<8x128xbf16>
    %cst_13 = arith.constant dense<0.000000e+00> : vector<8x128xf32>
    %48 = tpu.matmul %47, %13, %cst_13 {dimension_numbers = #tpu.dot_dimension_numbers<[1], [0], [0], [1], [0, 0, 1, 1], [], []>} : vector<8x128xbf16>, vector<128x128xbf16>, vector<8x128xf32> -> vector<8x128xf32>
    %49 = arith.addf %46, %48 : vector<8x128xf32>
    %50 = math.tanh %49 : vector<8x128xf32>
    %51 = vector.extract_strided_slice %12 {offsets = [6, 0, 0], sizes = [1, 8, 128], strides = [1, 1, 1]} : vector<8x8x128xf32> to vector<1x8x128xf32>
    %52 = vector.shape_cast %51 : vector<1x8x128xf32> to vector<8x128xf32>
    %53 = arith.truncf %50 : vector<8x128xf32> to vector<8x128xbf16>
    %cst_14 = arith.constant dense<0.000000e+00> : vector<8x128xf32>
    %54 = tpu.matmul %53, %13, %cst_14 {dimension_numbers = #tpu.dot_dimension_numbers<[1], [0], [0], [1], [0, 0, 1, 1], [], []>} : vector<8x128xbf16>, vector<128x128xbf16>, vector<8x128xf32> -> vector<8x128xf32>
    %55 = arith.addf %52, %54 : vector<8x128xf32>
    %56 = math.tanh %55 : vector<8x128xf32>
    %57 = vector.extract_strided_slice %12 {offsets = [7, 0, 0], sizes = [1, 8, 128], strides = [1, 1, 1]} : vector<8x8x128xf32> to vector<1x8x128xf32>
    %58 = vector.shape_cast %57 : vector<1x8x128xf32> to vector<8x128xf32>
    %59 = arith.truncf %56 : vector<8x128xf32> to vector<8x128xbf16>
    %cst_15 = arith.constant dense<0.000000e+00> : vector<8x128xf32>
    %60 = tpu.matmul %59, %13, %cst_15 {dimension_numbers = #tpu.dot_dimension_numbers<[1], [0], [0], [1], [0, 0, 1, 1], [], []>} : vector<8x128xbf16>, vector<128x128xbf16>, vector<8x128xf32> -> vector<8x128xf32>
    %61 = arith.addf %58, %60 : vector<8x128xf32>
    %62 = math.tanh %61 : vector<8x128xf32>
    %63 = arith.truncf %62 : vector<8x128xf32> to vector<8x128xbf16>
    %c0_16 = arith.constant 0 : index
    %c0_17 = arith.constant 0 : index
    %64 = vector.load %arg4[%c0_16, %c0_17] : memref<128x128xbf16, #tpu.memory_space<vmem>>, vector<128x128xbf16>
    %cst_18 = arith.constant dense<0.000000e+00> : vector<8x128xf32>
    %65 = tpu.matmul %63, %64, %cst_18 {dimension_numbers = #tpu.dot_dimension_numbers<[1], [0], [0], [1], [0, 0, 1, 1], [], []>} : vector<8x128xbf16>, vector<128x128xbf16>, vector<8x128xf32> -> vector<8x128xf32>
    %c0_19 = arith.constant 0 : index
    %c0_20 = arith.constant 0 : index
    %66 = vector.load %arg5[%c0_19, %c0_20] : memref<1x128xf32, #tpu.memory_space<vmem>>, vector<1x128xf32>
    %67 = vector.broadcast %66 : vector<1x128xf32> to vector<8x128xf32>
    %68 = arith.addf %65, %67 : vector<8x128xf32>
    %cst_21 = arith.constant dense<0xFF800000> : vector<8xf32>
    %69 = vector.multi_reduction <maximumf>, %68, %cst_21 [1] : vector<8x128xf32> to vector<8xf32>
    %70 = vector.shape_cast %69 : vector<8xf32> to vector<8x1xf32>
    %71 = vector.broadcast %70 : vector<8x1xf32> to vector<8x128xf32>
    %72 = arith.subf %68, %71 : vector<8x128xf32>
    %73 = math.exp %72 : vector<8x128xf32>
    %cst_22 = arith.constant dense<0.000000e+00> : vector<8xf32>
    %74 = vector.multi_reduction <add>, %73, %cst_22 [1] : vector<8x128xf32> to vector<8xf32>
    %75 = vector.shape_cast %74 : vector<8xf32> to vector<8x1xf32>
    %76 = tpu.reciprocal %75 {approx = true} : vector<8x1xf32> -> vector<8x1xf32>
    %77 = vector.broadcast %76 : vector<8x1xf32> to vector<8x128xf32>
    %78 = arith.mulf %73, %77 : vector<8x128xf32>
    %c0_23 = arith.constant 0 : index
    %c0_24 = arith.constant 0 : index
    %79 = vector.load %arg6[%c0_23, %c0_24] : memref<8x128xf32, #tpu.memory_space<vmem>>, vector<8x128xf32>
    tpu.vector_store %arg6[%c0_23, %c0_24], %78 {strides = array<i32>} : memref<8x128xf32, #tpu.memory_space<vmem>>, vector<8x128xf32>,
    return
  }
}

</mosaic_0001>

<llo_original>
// kernel: _lambda_.1
$region0: #{_lambda_.1}
  #allocation0 [shape = 'u32[]', space=smem, size = 0x4, offset = 0x4, fixed_abs, tag = 'smem constant byte address 0x4 - core index']
  #allocation1 [shape = 'u32[144,128]{1,0:T(1,128)}', space=vmem, size = 0x12000, scoped, tag = 'internal scratch']
  %s0 = inlined_call_operand.vmem [shape: s32[64,1], index: 0, kind: input, shape index: {}]
  %s1 = inlined_call_operand.hbm [shape: bf16[128,128], index: 1, kind: input, shape index: {}]
  %s2 = inlined_call_operand.hbm [shape: bf16[128,128], index: 2, kind: input, shape index: {}]
  %s3 = inlined_call_operand.vmem [shape: f32[1,128], index: 3, kind: input, shape index: {}]
  %s4 = inlined_call_operand.vmem [shape: bf16[128,128], index: 4, kind: input, shape index: {}]
  %s5 = inlined_call_operand.vmem [shape: f32[1,128], index: 5, kind: input, shape index: {}]
  %s6 = inlined_call_operand.vmem [shape: f32[8,128], index: 6, kind: output, shape index: {}]
  %s7 = sld [smem:[#allocation0]]
  $region42: #{_lambda_.1} parent=0
    _
  %s9 = ssub.s32 1, %s7
  %s10 = scalar_select 0, %s9, %s7
  $region1: #{_lambda_.1} parent=0
    #allocation2 [shape = 'u8[32768]{0}', space=vmem, size = 0x8000, scoped, tag = 'input window, operand 1, single buffered']
    #allocation3 [shape = 's32[1]{0}', space=sflag, size = 0x4, scoped, tag = 'scoped memory for _lambda_.1']
    #allocation4 [shape = 'u8[32768]{0}', space=vmem, size = 0x8000, scoped, tag = 'input window, operand 2, single buffered']
    #allocation5 [shape = 's32[1]{0}', space=sflag, size = 0x4, scoped, tag = 'scoped memory for _lambda_.1']
    %11 = vsyncpa [#allocation3], 0
    %12 = vsyncpa [#allocation5], 0
    // Predicated region
    $region2: #{_lambda_.1} parent=1 // pred_check
      _
    $region3: #{_lambda_.1} parent=1 // pred_check_branch
      %14 = sbr.rel (0) target = $region5
    $region4: #{_lambda_.1} parent=1 // pred_region
      _
    $region5: #{_lambda_.1} parent=1 // pred_fallthru
      _
    // Predicated region
    $region6: #{_lambda_.1} parent=1 // pred_check
      _
    $region7: #{_lambda_.1} parent=1 // pred_check_branch
      %16 = sbr.rel (0) target = $region9
    $region8: #{_lambda_.1} parent=1 // pred_region
      %s18 = ssub.s32 1024, 1024
      %19 = vsyncadd [#allocation3], %s18
      %s20 = sshll.u32 [#allocation2], 4
      %s21 = int_to_ptr.vmem [resolvable:$true] %s20
      %26 = dma.hbm_to_vmem [thread:$0]  %s1, 1024, %s21, [#allocation3], 64, 64, 4
    $region9: #{_lambda_.1} parent=1 // pred_fallthru
      _
    // Predicated region
    $region10: #{_lambda_.1} parent=1 // pred_check
      _
    $region11: #{_lambda_.1} parent=1 // pred_check_branch
      %28 = sbr.rel (0) target = $region13
    $region12: #{_lambda_.1} parent=1 // pred_region
      %s30 = ssub.s32 1024, 1024
      %31 = vsyncadd [#allocation5], %s30
      %s32 = sshll.u32 [#allocation4], 4
      %s33 = int_to_ptr.vmem [resolvable:$true] %s32
      %38 = dma.hbm_to_vmem [thread:$0]  %s2, 1024, %s33, [#allocation5], 64, 64, 4
    $region13: #{_lambda_.1} parent=1 // pred_fallthru
      _
    // Predicated region
    $region14: #{_lambda_.1} parent=1 // pred_check
      _
    $region15: #{_lambda_.1} parent=1 // pred_check_branch
      %40 = sbr.rel (0) target = $region17
    $region16: #{_lambda_.1} parent=1 // pred_region
      _
    $region17: #{_lambda_.1} parent=1 // pred_fallthru
      _
    // Predicated region
    $region18: #{_lambda_.1} parent=1 // pred_check
      _
    $region19: #{_lambda_.1} parent=1 // pred_check_branch
      %42 = sbr.rel (0) target = $region21
    $region20: #{_lambda_.1} parent=1 // pred_region
      _
    $region21: #{_lambda_.1} parent=1 // pred_fallthru
      _
    // Predicated region
    $region22: #{_lambda_.1} parent=1 // pred_check
      _
    $region23: #{_lambda_.1} parent=1 // pred_check_branch
      %44 = sbr.rel (0) target = $region25
    $region24: #{_lambda_.1} parent=1 // pred_region
      _
    $region25: #{_lambda_.1} parent=1 // pred_fallthru
      _
    // Predicated region
    $region26: #{_lambda_.1} parent=1 // pred_check
      _
    $region27: #{_lambda_.1} parent=1 // pred_check_branch
      %46 = sbr.rel (0) target = $region29
    $region28: #{_lambda_.1} parent=1 // pred_region
      %47 = dma.done [#allocation3], 1024
    $region29: #{_lambda_.1} parent=1 // pred_fallthru
      _
    // Predicated region
    $region30: #{_lambda_.1} parent=1 // pred_check
      _
    $region31: #{_lambda_.1} parent=1 // pred_check_branch
      %49 = sbr.rel (0) target = $region33
    $region32: #{_lambda_.1} parent=1 // pred_region
      %50 = dma.done [#allocation5], 1024
    $region33: #{_lambda_.1} parent=1 // pred_fallthru
      _
    %v52 = vld [vmem:[%s0] sm:$0xff]
    %v53 = vld [vmem:[%s0 + $0x8] sm:$0xff]
    %v54 = vld [vmem:[%s0 + $0x10] sm:$0xff]
    %v55 = vld [vmem:[%s0 + $0x18] sm:$0xff]
    %v56 = vld [vmem:[%s0 + $0x20] sm:$0xff]
    %v57 = vld [vmem:[%s0 + $0x28] sm:$0xff]
    %v58 = vld [vmem:[%s0 + $0x30] sm:$0xff]
    %v59 = vld [vmem:[%s0 + $0x38] sm:$0xff]
    %v60 = vlaneseq
    %v61 = vand.u32 %v60, 127
    %62 = vset.pattern.permute.xlu0 0
    %63 = vperm.xlu0 %62, %v52
    %v64 = vpop.permute.xlu0 %63
    %65 = vset.pattern.permute.xlu0 0
    %66 = vperm.xlu0 %65, %v53
    %v67 = vpop.permute.xlu0 %66
    %68 = vset.pattern.permute.xlu0 0
    %69 = vperm.xlu0 %68, %v54
    %v70 = vpop.permute.xlu0 %69
    %71 = vset.pattern.permute.xlu0 0
    %72 = vperm.xlu0 %71, %v55
    %v73 = vpop.permute.xlu0 %72
    %74 = vset.pattern.permute.xlu0 0
    %75 = vperm.xlu0 %74, %v56
    %v76 = vpop.permute.xlu0 %75
    %77 = vset.pattern.permute.xlu0 0
    %78 = vperm.xlu0 %77, %v57
    %v79 = vpop.permute.xlu0 %78
    %80 = vset.pattern.permute.xlu0 0
    %81 = vperm.xlu0 %80, %v58
    %v82 = vpop.permute.xlu0 %81
    %83 = vset.pattern.permute.xlu0 0
    %84 = vperm.xlu0 %83, %v59
    %v85 = vpop.permute.xlu0 %84
    %vm86 = vcmp.eq.s32.totalorder %v64, %v61
    %vm87 = vcmp.eq.s32.totalorder %v67, %v61
    %vm88 = vcmp.eq.s32.totalorder %v70, %v61
    %vm89 = vcmp.eq.s32.totalorder %v73, %v61
    %vm90 = vcmp.eq.s32.totalorder %v76, %v61
    %vm91 = vcmp.eq.s32.totalorder %v79, %v61
    %vm92 = vcmp.eq.s32.totalorder %v82, %v61
    %vm93 = vcmp.eq.s32.totalorder %v85, %v61
    %v94 = vsel %vm86, 1, 0
    %v95 = vsel %vm87, 1, 0
    %v96 = vsel %vm88, 1, 0
    %v97 = vsel %vm89, 1, 0
    %v98 = vsel %vm90, 1, 0
    %v99 = vsel %vm91, 1, 0
    %v100 = vsel %vm92, 1, 0
    %v101 = vsel %vm93, 1, 0
    %v102 = vcvt.s32.f32 %v94
    %v103 = vcvt.s32.f32 %v95
    %v104 = vcvt.s32.f32 %v96
    %v105 = vcvt.s32.f32 %v97
    %v106 = vcvt.s32.f32 %v98
    %v107 = vcvt.s32.f32 %v99
    %v108 = vcvt.s32.f32 %v100
    %v109 = vcvt.s32.f32 %v101
    %v110 = vpack.c.bf16 %v103, %v102
    %v111 = vpack.c.bf16 %v105, %v104
    %v112 = vpack.c.bf16 %v107, %v106
    %v113 = vpack.c.bf16 %v109, %v108
    %v114 = vld [vmem:[#allocation2] sm:$0xf]
    %v115 = vld [vmem:[#allocation2 + $0x4] sm:$0xf]
    %v116 = vld [vmem:[#allocation2 + $0x8] sm:$0xf]
    %v117 = vld [vmem:[#allocation2 + $0xc] sm:$0xf]
    %v118 = vld [vmem:[#allocation2 + $0x10] sm:$0xf]
    %v119 = vld [vmem:[#allocation2 + $0x14] sm:$0xf]
    %v120 = vld [vmem:[#allocation2 + $0x18] sm:$0xf]
    %v121 = vld [vmem:[#allocation2 + $0x1c] sm:$0xf]
    %v122 = vld [vmem:[#allocation2 + $0x20] sm:$0xf]
    %v123 = vld [vmem:[#allocation2 + $0x24] sm:$0xf]
    %v124 = vld [vmem:[#allocation2 + $0x28] sm:$0xf]
    %v125 = vld [vmem:[#allocation2 + $0x2c] sm:$0xf]
    %v126 = vld [vmem:[#allocation2 + $0x30] sm:$0xf]
    %v127 = vld [vmem:[#allocation2 + $0x34] sm:$0xf]
    %v128 = vld [vmem:[#allocation2 + $0x38] sm:$0xf]
    %v129 = vld [vmem:[#allocation2 + $0x3c] sm:$0xf]
    %v130 = vld [vmem:[%s3] sm:$0x1]
    %v132 = vlaneseq
    %v133 = vshrl.u32 %v132, 7
    %v134 = vsub.s32 0, %v133
    %v135 = vrot.slane %v130, %v134
    %v153 = vunpack.c.l.b16 %v114
    %v154 = vunpack.c.l.b16 %v115
    %v155 = vunpack.c.l.b16 %v116
    %v156 = vunpack.c.l.b16 %v117
    %v157 = vunpack.c.l.b16 %v118
    %v158 = vunpack.c.l.b16 %v119
    %v159 = vunpack.c.l.b16 %v120
    %v160 = vunpack.c.l.b16 %v121
    %v161 = vunpack.c.l.b16 %v122
    %v162 = vunpack.c.l.b16 %v123
    %v163 = vunpack.c.l.b16 %v124
    %v164 = vunpack.c.l.b16 %v125
    %v165 = vunpack.c.l.b16 %v126
    %v166 = vunpack.c.l.b16 %v127
    %v167 = vunpack.c.l.b16 %v128
    %v168 = vunpack.c.l.b16 %v129
    %v169 = vpack.c.b16 %v154, %v153
    %v170 = vpack.c.b16 %v156, %v155
    %v171 = vpack.c.b16 %v158, %v157
    %v172 = vpack.c.b16 %v160, %v159
    %v173 = vpack.c.b16 %v162, %v161
    %v174 = vpack.c.b16 %v164, %v163
    %v175 = vpack.c.b16 %v166, %v165
    %v176 = vpack.c.b16 %v168, %v167
    %185 = vmatprep.subr.bf16.mxu0 0
    %186 = vmatpush1.bf16.msra.mxu0 %v176
    %187 = vmatprep.subr.bf16.mxu0 0
    %188 = vmatpush1.bf16.msra.mxu0 %v175
    %189 = vmatprep.subr.bf16.mxu0 0
    %190 = vmatpush1.bf16.msra.mxu0 %v174
    %191 = vmatprep.subr.bf16.mxu0 0
    %192 = vmatpush1.bf16.msra.mxu0 %v173
    %193 = vmatprep.subr.bf16.mxu0 0
    %194 = vmatpush1.bf16.msra.mxu0 %v172
    %195 = vmatprep.subr.bf16.mxu0 0
    %196 = vmatpush1.bf16.msra.mxu0 %v171
    %197 = vmatprep.subr.bf16.mxu0 0
    %198 = vmatpush1.bf16.msra.mxu0 %v170
    %199 = vmatprep.subr.bf16.mxu0 0
    %200 = vmatpush1.bf16.msra.mxu0 %v169
    %201 = vmatprep.subr.bf16.mxu0 0
    %202 = vmatpush2.bf16.msra.mxu0 0
    %203 = vmatprep.subr.bf16.mxu0 0
    %204 = vmatpush2.bf16.msra.mxu0 0
    %205 = vmatprep.subr.bf16.mxu0 0
    %206 = vmatpush2.bf16.msra.mxu0 0
    %207 = vmatprep.subr.bf16.mxu0 0
    %208 = vmatpush2.bf16.msra.mxu0 0
    %209 = vmatprep.subr.bf16.mxu0 0
    %210 = vmatpush2.bf16.msra.mxu0 0
    %211 = vmatprep.subr.bf16.mxu0 0
    %212 = vmatpush2.bf16.msra.mxu0 0
    %213 = vmatprep.subr.bf16.mxu0 0
    %214 = vmatpush2.bf16.msra.mxu0 0
    %215 = vmatprep.subr.bf16.mxu0 0
    %216 = vmatpush2.bf16.msra.mxu0 0
    %217 = vmatprep.mubr.bf16.mxu0 0
    %218 = vmatmul.mubr.bf16.gmra.mxu0 %v110
    %v219 = vpop.f32.mrf.mxu0
    %v220 = vadd.f32 %v135, %v219
    %v221 = vpop.f32.mrf.mxu0
    %v222 = vpop.f32.mrf.mxu0
    %v223 = vadd.f32 %v135, %v222
    %v224 = vpop.f32.mrf.mxu0
    %225 = vmatprep.mubr.bf16.mxu0 0
    %226 = vmatmul.mubr.bf16.gmra.mxu0 %v111
    %v227 = vpop.f32.mrf.mxu0
    %v228 = vadd.f32 %v135, %v227
    %v229 = vpop.f32.mrf.mxu0
    %v230 = vpop.f32.mrf.mxu0
    %v231 = vadd.f32 %v135, %v230
    %v232 = vpop.f32.mrf.mxu0
    %233 = vmatprep.mubr.bf16.mxu0 0
    %234 = vmatmul.mubr.bf16.gmra.mxu0 %v112
    %v235 = vpop.f32.mrf.mxu0
    %v236 = vadd.f32 %v135, %v235
    %v237 = vpop.f32.mrf.mxu0
    %v238 = vpop.f32.mrf.mxu0
    %v239 = vadd.f32 %v135, %v238
    %v240 = vpop.f32.mrf.mxu0
    %241 = vmatprep.mubr.bf16.mxu0 0
    %242 = vmatmul.mubr.bf16.gmra.mxu0 %v113
    %v243 = vpop.f32.mrf.mxu0
    %v244 = vadd.f32 %v135, %v243
    %v245 = vpop.f32.mrf.mxu0
    %v246 = vpop.f32.mrf.mxu0
    %v247 = vadd.f32 %v135, %v246
    %v248 = vpop.f32.mrf.mxu0
    %249 = vdwg.mxu0
    %v250 = vld [vmem:[#allocation4] sm:$0xf]
    %v251 = vld [vmem:[#allocation4 + $0x4] sm:$0xf]
    %v252 = vld [vmem:[#allocation4 + $0x8] sm:$0xf]
    %v253 = vld [vmem:[#allocation4 + $0xc] sm:$0xf]
    %v254 = vld [vmem:[#allocation4 + $0x10] sm:$0xf]
    %v255 = vld [vmem:[#allocation4 + $0x14] sm:$0xf]
    %v256 = vld [vmem:[#allocation4 + $0x18] sm:$0xf]
    %v257 = vld [vmem:[#allocation4 + $0x1c] sm:$0xf]
    %v258 = vld [vmem:[#allocation4 + $0x20] sm:$0xf]
    %v259 = vld [vmem:[#allocation4 + $0x24] sm:$0xf]
    %v260 = vld [vmem:[#allocation4 + $0x28] sm:$0xf]
    %v261 = vld [vmem:[#allocation4 + $0x2c] sm:$0xf]
    %v262 = vld [vmem:[#allocation4 + $0x30] sm:$0xf]
    %v263 = vld [vmem:[#allocation4 + $0x34] sm:$0xf]
    %v264 = vld [vmem:[#allocation4 + $0x38] sm:$0xf]
    %v265 = vld [vmem:[#allocation4 + $0x3c] sm:$0xf]
    %v282 = vunpack.c.l.b16 %v250
    %v283 = vunpack.c.l.b16 %v251
    %v284 = vunpack.c.l.b16 %v252
    %v285 = vunpack.c.l.b16 %v253
    %v286 = vunpack.c.l.b16 %v254
    %v287 = vunpack.c.l.b16 %v255
    %v288 = vunpack.c.l.b16 %v256
    %v289 = vunpack.c.l.b16 %v257
    %v290 = vunpack.c.l.b16 %v258
    %v291 = vunpack.c.l.b16 %v259
    %v292 = vunpack.c.l.b16 %v260
    %v293 = vunpack.c.l.b16 %v261
    %v294 = vunpack.c.l.b16 %v262
    %v295 = vunpack.c.l.b16 %v263
    %v296 = vunpack.c.l.b16 %v264
    %v297 = vunpack.c.l.b16 %v265
    %v298 = vpack.c.b16 %v283, %v282
    %v299 = vpack.c.b16 %v285, %v284
    %v300 = vpack.c.b16 %v287, %v286
    %v301 = vpack.c.b16 %v289, %v288
    %v302 = vpack.c.b16 %v291, %v290
    %v303 = vpack.c.b16 %v293, %v292
    %v304 = vpack.c.b16 %v295, %v294
    %v305 = vpack.c.b16 %v297, %v296
    %314 = vmatprep.subr.bf16.mxu0 0
    %315 = vmatpush1.bf16.msra.mxu0 %v305
    %316 = vmatprep.subr.bf16.mxu0 0
    %317 = vmatpush1.bf16.msra.mxu0 %v304
    %318 = vmatprep.subr.bf16.mxu0 0
    %319 = vmatpush1.bf16.msra.mxu0 %v303
    %320 = vmatprep.subr.bf16.mxu0 0
    %321 = vmatpush1.bf16.msra.mxu0 %v302
    %322 = vmatprep.subr.bf16.mxu0 0
    %323 = vmatpush1.bf16.msra.mxu0 %v301
    %324 = vmatprep.subr.bf16.mxu0 0
    %325 = vmatpush1.bf16.msra.mxu0 %v300
    %326 = vmatprep.subr.bf16.mxu0 0
    %327 = vmatpush1.bf16.msra.mxu0 %v299
    %328 = vmatprep.subr.bf16.mxu0 0
    %329 = vmatpush1.bf16.msra.mxu0 %v298
    %330 = vmatprep.subr.bf16.mxu0 0
    %331 = vmatpush2.bf16.msra.mxu0 0
    %332 = vmatprep.subr.bf16.mxu0 0
    %333 = vmatpush2.bf16.msra.mxu0 0
    %334 = vmatprep.subr.bf16.mxu0 0
    %335 = vmatpush2.bf16.msra.mxu0 0
    %336 = vmatprep.subr.bf16.mxu0 0
    %337 = vmatpush2.bf16.msra.mxu0 0
    %338 = vmatprep.subr.bf16.mxu0 0
    %339 = vmatpush2.bf16.msra.mxu0 0
    %340 = vmatprep.subr.bf16.mxu0 0
    %341 = vmatpush2.bf16.msra.mxu0 0
    %342 = vmatprep.subr.bf16.mxu0 0
    %343 = vmatpush2.bf16.msra.mxu0 0
    %344 = vmatprep.subr.bf16.mxu0 0
    %345 = vmatpush2.bf16.msra.mxu0 0
    %346 = vmatprep.mubr.bf16.mxu0 0
    %347 = vmatmul.mubr.bf16.gmra.mxu0 0
    %v348 = vpop.f32.mrf.mxu0
    %v349 = vadd.f32 0.0, %v348
    %v350 = vpop.f32.mrf.mxu0
    %v351 = vpop.f32.mrf.mxu0
    %v352 = vpop.f32.mrf.mxu0
    %353 = vdwg.mxu0
    %v354 = vadd.f32 %v220, %v349
    %v355 = vtanh.pop %v354
    %v356 = vpack.c.bf16 %v355, %v355
    %357 = vmatprep.subr.bf16.mxu0 0
    %358 = vmatpush1.bf16.msra.mxu0 %v305
    %359 = vmatprep.subr.bf16.mxu0 0
    %360 = vmatpush1.bf16.msra.mxu0 %v304
    %361 = vmatprep.subr.bf16.mxu0 0
    %362 = vmatpush1.bf16.msra.mxu0 %v303
    %363 = vmatprep.subr.bf16.mxu0 0
    %364 = vmatpush1.bf16.msra.mxu0 %v302
    %365 = vmatprep.subr.bf16.mxu0 0
    %366 = vmatpush1.bf16.msra.mxu0 %v301
    %367 = vmatprep.subr.bf16.mxu0 0
    %368 = vmatpush1.bf16.msra.mxu0 %v300
    %369 = vmatprep.subr.bf16.mxu0 0
    %370 = vmatpush1.bf16.msra.mxu0 %v299
    %371 = vmatprep.subr.bf16.mxu0 0
    %372 = vmatpush1.bf16.msra.mxu0 %v298
    %373 = vmatprep.subr.bf16.mxu0 0
    %374 = vmatpush2.bf16.msra.mxu0 0
    %375 = vmatprep.subr.bf16.mxu0 0
    %376 = vmatpush2.bf16.msra.mxu0 0
    %377 = vmatprep.subr.bf16.mxu0 0
    %378 = vmatpush2.bf16.msra.mxu0 0
    %379 = vmatprep.subr.bf16.mxu0 0
    %380 = vmatpush2.bf16.msra.mxu0 0
    %381 = vmatprep.subr.bf16.mxu0 0
    %382 = vmatpush2.bf16.msra.mxu0 0
    %383 = vmatprep.subr.bf16.mxu0 0
    %384 = vmatpush2.bf16.msra.mxu0 0
    %385 = vmatprep.subr.bf16.mxu0 0
    %386 = vmatpush2.bf16.msra.mxu0 0
    %387 = vmatprep.subr.bf16.mxu0 0
    %388 = vmatpush2.bf16.msra.mxu0 0
    %389 = vmatprep.mubr.bf16.mxu0 0
    %390 = vmatmul.mubr.bf16.gmra.mxu0 %v356
    %v391 = vpop.f32.mrf.mxu0
    %v392 = vadd.f32 0.0, %v391
    %v393 = vpop.f32.mrf.mxu0
    %v394 = vpop.f32.mrf.mxu0
    %v395 = vpop.f32.mrf.mxu0
    %396 = vdwg.mxu0
    %v397 = vadd.f32 %v223, %v392
    %v398 = vtanh.pop %v397
    %v399 = vpack.c.bf16 %v398, %v398
    %400 = vmatprep.subr.bf16.mxu0 0
    %401 = vmatpush1.bf16.msra.mxu0 %v305
    %402 = vmatprep.subr.bf16.mxu0 0
    %403 = vmatpush1.bf16.msra.mxu0 %v304
    %404 = vmatprep.subr.bf16.mxu0 0
    %405 = vmatpush1.bf16.msra.mxu0 %v303
    %406 = vmatprep.subr.bf16.mxu0 0
    %407 = vmatpush1.bf16.msra.mxu0 %v302
    %408 = vmatprep.subr.bf16.mxu0 0
    %409 = vmatpush1.bf16.msra.mxu0 %v301
    %410 = vmatprep.subr.bf16.mxu0 0
    %411 = vmatpush1.bf16.msra.mxu0 %v300
    %412 = vmatprep.subr.bf16.mxu0 0
    %413 = vmatpush1.bf16.msra.mxu0 %v299
    %414 = vmatprep.subr.bf16.mxu0 0
    %415 = vmatpush1.bf16.msra.mxu0 %v298
    %416 = vmatprep.subr.bf16.mxu0 0
    %417 = vmatpush2.bf16.msra.mxu0 0
    %418 = vmatprep.subr.bf16.mxu0 0
    %419 = vmatpush2.bf16.msra.mxu0 0
    %420 = vmatprep.subr.bf16.mxu0 0
    %421 = vmatpush2.bf16.msra.mxu0 0
    %422 = vmatprep.subr.bf16.mxu0 0
    %423 = vmatpush2.bf16.msra.mxu0 0
    %424 = vmatprep.subr.bf16.mxu0 0
    %425 = vmatpush2.bf16.msra.mxu0 0
    %426 = vmatprep.subr.bf16.mxu0 0
    %427 = vmatpush2.bf16.msra.mxu0 0
    %428 = vmatprep.subr.bf16.mxu0 0
    %429 = vmatpush2.bf16.msra.mxu0 0
    %430 = vmatprep.subr.bf16.mxu0 0
    %431 = vmatpush2.bf16.msra.mxu0 0
    %432 = vmatprep.mubr.bf16.mxu0 0
    %433 = vmatmul.mubr.bf16.gmra.mxu0 %v399
    %v434 = vpop.f32.mrf.mxu0
    %v435 = vadd.f32 0.0, %v434
    %v436 = vpop.f32.mrf.mxu0
    %v437 = vpop.f32.mrf.mxu0
    %v438 = vpop.f32.mrf.mxu0
    %439 = vdwg.mxu0
    %v440 = vadd.f32 %v228, %v435
    %v441 = vtanh.pop %v440
    %v442 = vpack.c.bf16 %v441, %v441
    %443 = vmatprep.subr.bf16.mxu0 0
    %444 = vmatpush1.bf16.msra.mxu0 %v305
    %445 = vmatprep.subr.bf16.mxu0 0
    %446 = vmatpush1.bf16.msra.mxu0 %v304
    %447 = vmatprep.subr.bf16.mxu0 0
    %448 = vmatpush1.bf16.msra.mxu0 %v303
    %449 = vmatprep.subr.bf16.mxu0 0
    %450 = vmatpush1.bf16.msra.mxu0 %v302
    %451 = vmatprep.subr.bf16.mxu0 0
    %452 = vmatpush1.bf16.msra.mxu0 %v301
    %453 = vmatprep.subr.bf16.mxu0 0
    %454 = vmatpush1.bf16.msra.mxu0 %v300
    %455 = vmatprep.subr.bf16.mxu0 0
    %456 = vmatpush1.bf16.msra.mxu0 %v299
    %457 = vmatprep.subr.bf16.mxu0 0
    %458 = vmatpush1.bf16.msra.mxu0 %v298
    %459 = vmatprep.subr.bf16.mxu0 0
    %460 = vmatpush2.bf16.msra.mxu0 0
    %461 = vmatprep.subr.bf16.mxu0 0
    %462 = vmatpush2.bf16.msra.mxu0 0
    %463 = vmatprep.subr.bf16.mxu0 0
    %464 = vmatpush2.bf16.msra.mxu0 0
    %465 = vmatprep.subr.bf16.mxu0 0
    %466 = vmatpush2.bf16.msra.mxu0 0
    %467 = vmatprep.subr.bf16.mxu0 0
    %468 = vmatpush2.bf16.msra.mxu0 0
    %469 = vmatprep.subr.bf16.mxu0 0
    %470 = vmatpush2.bf16.msra.mxu0 0
    %471 = vmatprep.subr.bf16.mxu0 0
    %472 = vmatpush2.bf16.msra.mxu0 0
    %473 = vmatprep.subr.bf16.mxu0 0
    %474 = vmatpush2.bf16.msra.mxu0 0
    %475 = vmatprep.mubr.bf16.mxu0 0
    %476 = vmatmul.mubr.bf16.gmra.mxu0 %v442
    %v477 = vpop.f32.mrf.mxu0
    %v478 = vadd.f32 0.0, %v477
    %v479 = vpop.f32.mrf.mxu0
    %v480 = vpop.f32.mrf.mxu0
    %v481 = vpop.f32.mrf.mxu0
    %482 = vdwg.mxu0
    %v483 = vadd.f32 %v231, %v478
    %v484 = vtanh.pop %v483
    %v485 = vpack.c.bf16 %v484, %v484
    %486 = vmatprep.subr.bf16.mxu0 0
    %487 = vmatpush1.bf16.msra.mxu0 %v305
    %488 = vmatprep.subr.bf16.mxu0 0
    %489 = vmatpush1.bf16.msra.mxu0 %v304
    %490 = vmatprep.subr.bf16.mxu0 0
    %491 = vmatpush1.bf16.msra.mxu0 %v303
    %492 = vmatprep.subr.bf16.mxu0 0
    %493 = vmatpush1.bf16.msra.mxu0 %v302
    %494 = vmatprep.subr.bf16.mxu0 0
    %495 = vmatpush1.bf16.msra.mxu0 %v301
    %496 = vmatprep.subr.bf16.mxu0 0
    %497 = vmatpush1.bf16.msra.mxu0 %v300
    %498 = vmatprep.subr.bf16.mxu0 0
    %499 = vmatpush1.bf16.msra.mxu0 %v299
    %500 = vmatprep.subr.bf16.mxu0 0
    %501 = vmatpush1.bf16.msra.mxu0 %v298
    %502 = vmatprep.subr.bf16.mxu0 0
    %503 = vmatpush2.bf16.msra.mxu0 0
    %504 = vmatprep.subr.bf16.mxu0 0
    %505 = vmatpush2.bf16.msra.mxu0 0
    %506 = vmatprep.subr.bf16.mxu0 0
    %507 = vmatpush2.bf16.msra.mxu0 0
    %508 = vmatprep.subr.bf16.mxu0 0
    %509 = vmatpush2.bf16.msra.mxu0 0
    %510 = vmatprep.subr.bf16.mxu0 0
    %511 = vmatpush2.bf16.msra.mxu0 0
    %512 = vmatprep.subr.bf16.mxu0 0
    %513 = vmatpush2.bf16.msra.mxu0 0
    %514 = vmatprep.subr.bf16.mxu0 0
    %515 = vmatpush2.bf16.msra.mxu0 0
    %516 = vmatprep.subr.bf16.mxu0 0
    %517 = vmatpush2.bf16.msra.mxu0 0
    %518 = vmatprep.mubr.bf16.mxu0 0
    %519 = vmatmul.mubr.bf16.gmra.mxu0 %v485
    %v520 = vpop.f32.mrf.mxu0
    %v521 = vadd.f32 0.0, %v520
    %v522 = vpop.f32.mrf.mxu0
    %v523 = vpop.f32.mrf.mxu0
    %v524 = vpop.f32.mrf.mxu0
    %525 = vdwg.mxu0
    %v526 = vadd.f32 %v236, %v521
    %v527 = vtanh.pop %v526
    %v528 = vpack.c.bf16 %v527, %v527
    %529 = vmatprep.subr.bf16.mxu0 0
    %530 = vmatpush1.bf16.msra.mxu0 %v305
    %531 = vmatprep.subr.bf16.mxu0 0
    %532 = vmatpush1.bf16.msra.mxu0 %v304
    %533 = vmatprep.subr.bf16.mxu0 0
    %534 = vmatpush1.bf16.msra.mxu0 %v303
    %535 = vmatprep.subr.bf16.mxu0 0
    %536 = vmatpush1.bf16.msra.mxu0 %v302
    %537 = vmatprep.subr.bf16.mxu0 0
    %538 = vmatpush1.bf16.msra.mxu0 %v301
    %539 = vmatprep.subr.bf16.mxu0 0
    %540 = vmatpush1.bf16.msra.mxu0 %v300
    %541 = vmatprep.subr.bf16.mxu0 0
    %542 = vmatpush1.bf16.msra.mxu0 %v299
    %543 = vmatprep.subr.bf16.mxu0 0
    %544 = vmatpush1.bf16.msra.mxu0 %v298
    %545 = vmatprep.subr.bf16.mxu0 0
    %546 = vmatpush2.bf16.msra.mxu0 0
    %547 = vmatprep.subr.bf16.mxu0 0
    %548 = vmatpush2.bf16.msra.mxu0 0
    %549 = vmatprep.subr.bf16.mxu0 0
    %550 = vmatpush2.bf16.msra.mxu0 0
    %551 = vmatprep.subr.bf16.mxu0 0
    %552 = vmatpush2.bf16.msra.mxu0 0
    %553 = vmatprep.subr.bf16.mxu0 0
    %554 = vmatpush2.bf16.msra.mxu0 0
    %555 = vmatprep.subr.bf16.mxu0 0
    %556 = vmatpush2.bf16.msra.mxu0 0
    %557 = vmatprep.subr.bf16.mxu0 0
    %558 = vmatpush2.bf16.msra.mxu0 0
    %559 = vmatprep.subr.bf16.mxu0 0
    %560 = vmatpush2.bf16.msra.mxu0 0
    %561 = vmatprep.mubr.bf16.mxu0 0
    %562 = vmatmul.mubr.bf16.gmra.mxu0 %v528
    %v563 = vpop.f32.mrf.mxu0
    %v564 = vadd.f32 0.0, %v563
    %v565 = vpop.f32.mrf.mxu0
    %v566 = vpop.f32.mrf.mxu0
    %v567 = vpop.f32.mrf.mxu0
    %568 = vdwg.mxu0
    %v569 = vadd.f32 %v239, %v564
    %v570 = vtanh.pop %v569
    %v571 = vpack.c.bf16 %v570, %v570
    %572 = vmatprep.subr.bf16.mxu0 0
    %573 = vmatpush1.bf16.msra.mxu0 %v305
    %574 = vmatprep.subr.bf16.mxu0 0
    %575 = vmatpush1.bf16.msra.mxu0 %v304
    %576 = vmatprep.subr.bf16.mxu0 0
    %577 = vmatpush1.bf16.msra.mxu0 %v303
    %578 = vmatprep.subr.bf16.mxu0 0
    %579 = vmatpush1.bf16.msra.mxu0 %v302
    %580 = vmatprep.subr.bf16.mxu0 0
    %581 = vmatpush1.bf16.msra.mxu0 %v301
    %582 = vmatprep.subr.bf16.mxu0 0
    %583 = vmatpush1.bf16.msra.mxu0 %v300
    %584 = vmatprep.subr.bf16.mxu0 0
    %585 = vmatpush1.bf16.msra.mxu0 %v299
    %586 = vmatprep.subr.bf16.mxu0 0
    %587 = vmatpush1.bf16.msra.mxu0 %v298
    %588 = vmatprep.subr.bf16.mxu0 0
    %589 = vmatpush2.bf16.msra.mxu0 0
    %590 = vmatprep.subr.bf16.mxu0 0
    %591 = vmatpush2.bf16.msra.mxu0 0
    %592 = vmatprep.subr.bf16.mxu0 0
    %593 = vmatpush2.bf16.msra.mxu0 0
    %594 = vmatprep.subr.bf16.mxu0 0
    %595 = vmatpush2.bf16.msra.mxu0 0
    %596 = vmatprep.subr.bf16.mxu0 0
    %597 = vmatpush2.bf16.msra.mxu0 0
    %598 = vmatprep.subr.bf16.mxu0 0
    %599 = vmatpush2.bf16.msra.mxu0 0
    %600 = vmatprep.subr.bf16.mxu0 0
    %601 = vmatpush2.bf16.msra.mxu0 0
    %602 = vmatprep.subr.bf16.mxu0 0
    %603 = vmatpush2.bf16.msra.mxu0 0
    %604 = vmatprep.mubr.bf16.mxu0 0
    %605 = vmatmul.mubr.bf16.gmra.mxu0 %v571
    %v606 = vpop.f32.mrf.mxu0
    %v607 = vadd.f32 0.0, %v606
    %v608 = vpop.f32.mrf.mxu0
    %v609 = vpop.f32.mrf.mxu0
    %v610 = vpop.f32.mrf.mxu0
    %611 = vdwg.mxu0
    %v612 = vadd.f32 %v244, %v607
    %v613 = vtanh.pop %v612
    %v614 = vpack.c.bf16 %v613, %v613
    %615 = vmatprep.subr.bf16.mxu0 0
    %616 = vmatpush1.bf16.msra.mxu0 %v305
    %617 = vmatprep.subr.bf16.mxu0 0
    %618 = vmatpush1.bf16.msra.mxu0 %v304
    %619 = vmatprep.subr.bf16.mxu0 0
    %620 = vmatpush1.bf16.msra.mxu0 %v303
    %621 = vmatprep.subr.bf16.mxu0 0
    %622 = vmatpush1.bf16.msra.mxu0 %v302
    %623 = vmatprep.subr.bf16.mxu0 0
    %624 = vmatpush1.bf16.msra.mxu0 %v301
    %625 = vmatprep.subr.bf16.mxu0 0
    %626 = vmatpush1.bf16.msra.mxu0 %v300
    %627 = vmatprep.subr.bf16.mxu0 0
    %628 = vmatpush1.bf16.msra.mxu0 %v299
    %629 = vmatprep.subr.bf16.mxu0 0
    %630 = vmatpush1.bf16.msra.mxu0 %v298
    %631 = vmatprep.subr.bf16.mxu0 0
    %632 = vmatpush2.bf16.msra.mxu0 0
    %633 = vmatprep.subr.bf16.mxu0 0
    %634 = vmatpush2.bf16.msra.mxu0 0
    %635 = vmatprep.subr.bf16.mxu0 0
    %636 = vmatpush2.bf16.msra.mxu0 0
    %637 = vmatprep.subr.bf16.mxu0 0
    %638 = vmatpush2.bf16.msra.mxu0 0
    %639 = vmatprep.subr.bf16.mxu0 0
    %640 = vmatpush2.bf16.msra.mxu0 0
    %641 = vmatprep.subr.bf16.mxu0 0
    %642 = vmatpush2.bf16.msra.mxu0 0
    %643 = vmatprep.subr.bf16.mxu0 0
    %644 = vmatpush2.bf16.msra.mxu0 0
    %645 = vmatprep.subr.bf16.mxu0 0
    %646 = vmatpush2.bf16.msra.mxu0 0
    %647 = vmatprep.mubr.bf16.mxu0 0
    %648 = vmatmul.mubr.bf16.gmra.mxu0 %v614
    %v649 = vpop.f32.mrf.mxu0
    %v650 = vadd.f32 0.0, %v649
    %v651 = vpop.f32.mrf.mxu0
    %v652 = vpop.f32.mrf.mxu0
    %v653 = vpop.f32.mrf.mxu0
    %654 = vdwg.mxu0
    %v655 = vadd.f32 %v247, %v650
    %v656 = vtanh.pop %v655
    %v657 = vpack.c.bf16 %v656, %v656
    %v658 = vld [vmem:[%s4] sm:$0xf]
    %v659 = vld [vmem:[%s4 + $0x4] sm:$0xf]
    %v660 = vld [vmem:[%s4 + $0x8] sm:$0xf]
    %v661 = vld [vmem:[%s4 + $0xc] sm:$0xf]
    %v662 = vld [vmem:[%s4 + $0x10] sm:$0xf]
    %v663 = vld [vmem:[%s4 + $0x14] sm:$0xf]
    %v664 = vld [vmem:[%s4 + $0x18] sm:$0xf]
    %v665 = vld [vmem:[%s4 + $0x1c] sm:$0xf]
    %v666 = vld [vmem:[%s4 + $0x20] sm:$0xf]
    %v667 = vld [vmem:[%s4 + $0x24] sm:$0xf]
    %v668 = vld [vmem:[%s4 + $0x28] sm:$0xf]
    %v669 = vld [vmem:[%s4 + $0x2c] sm:$0xf]
    %v670 = vld [vmem:[%s4 + $0x30] sm:$0xf]
    %v671 = vld [vmem:[%s4 + $0x34] sm:$0xf]
    %v672 = vld [vmem:[%s4 + $0x38] sm:$0xf]
    %v673 = vld [vmem:[%s4 + $0x3c] sm:$0xf]
    %v674 = vld [vmem:[%s5] sm:$0x1]
    %v676 = vlaneseq
    %v677 = vshrl.u32 %v676, 7
    %v678 = vsub.s32 0, %v677
    %v679 = vrot.slane %v674, %v678
    %v697 = vunpack.c.l.b16 %v658
    %v698 = vunpack.c.l.b16 %v659
    %v699 = vunpack.c.l.b16 %v660
    %v700 = vunpack.c.l.b16 %v661
    %v701 = vunpack.c.l.b16 %v662
    %v702 = vunpack.c.l.b16 %v663
    %v703 = vunpack.c.l.b16 %v664
    %v704 = vunpack.c.l.b16 %v665
    %v705 = vunpack.c.l.b16 %v666
    %v706 = vunpack.c.l.b16 %v667
    %v707 = vunpack.c.l.b16 %v668
    %v708 = vunpack.c.l.b16 %v669
    %v709 = vunpack.c.l.b16 %v670
    %v710 = vunpack.c.l.b16 %v671
    %v711 = vunpack.c.l.b16 %v672
    %v712 = vunpack.c.l.b16 %v673
    %v713 = vpack.c.b16 %v698, %v697
    %v714 = vpack.c.b16 %v700, %v699
    %v715 = vpack.c.b16 %v702, %v701
    %v716 = vpack.c.b16 %v704, %v703
    %v717 = vpack.c.b16 %v706, %v705
    %v718 = vpack.c.b16 %v708, %v707
    %v719 = vpack.c.b16 %v710, %v709
    %v720 = vpack.c.b16 %v712, %v711
    %729 = vmatprep.subr.bf16.mxu0 0
    %730 = vmatpush1.bf16.msra.mxu0 %v720
    %731 = vmatprep.subr.bf16.mxu0 0
    %732 = vmatpush1.bf16.msra.mxu0 %v719
    %733 = vmatprep.subr.bf16.mxu0 0
    %734 = vmatpush1.bf16.msra.mxu0 %v718
    %735 = vmatprep.subr.bf16.mxu0 0
    %736 = vmatpush1.bf16.msra.mxu0 %v717
    %737 = vmatprep.subr.bf16.mxu0 0
    %738 = vmatpush1.bf16.msra.mxu0 %v716
    %739 = vmatprep.subr.bf16.mxu0 0
    %740 = vmatpush1.bf16.msra.mxu0 %v715
    %741 = vmatprep.subr.bf16.mxu0 0
    %742 = vmatpush1.bf16.msra.mxu0 %v714
    %743 = vmatprep.subr.bf16.mxu0 0
    %744 = vmatpush1.bf16.msra.mxu0 %v713
    %745 = vmatprep.subr.bf16.mxu0 0
    %746 = vmatpush2.bf16.msra.mxu0 0
    %747 = vmatprep.subr.bf16.mxu0 0
    %748 = vmatpush2.bf16.msra.mxu0 0
    %749 = vmatprep.subr.bf16.mxu0 0
    %750 = vmatpush2.bf16.msra.mxu0 0
    %751 = vmatprep.subr.bf16.mxu0 0
    %752 = vmatpush2.bf16.msra.mxu0 0
    %753 = vmatprep.subr.bf16.mxu0 0
    %754 = vmatpush2.bf16.msra.mxu0 0
    %755 = vmatprep.subr.bf16.mxu0 0
    %756 = vmatpush2.bf16.msra.mxu0 0
    %757 = vmatprep.subr.bf16.mxu0 0
    %758 = vmatpush2.bf16.msra.mxu0 0
    %759 = vmatprep.subr.bf16.mxu0 0
    %760 = vmatpush2.bf16.msra.mxu0 0
    %761 = vmatprep.mubr.bf16.mxu0 0
    %762 = vmatmul.mubr.bf16.gmra.mxu0 %v657
    %v763 = vpop.f32.mrf.mxu0
    %v764 = vadd.f32 %v679, %v763
    %v765 = vpop.f32.mrf.mxu0
    %v766 = vpop.f32.mrf.mxu0
    %v767 = vpop.f32.mrf.mxu0
    %768 = vdwg.mxu0
    %769 = vmax.xlane.f32.xlu0 %v764
    %v770 = vpop.xlane.xlu0 %769
    %v771 = vsub.f32 %v764, %v770
    %v772 = vmul.f32 %v771, 1.442695
    %v773 = vpow.pop %v772
    %774 = vadd.xlane.f32.xlu0 %v773
    %v775 = vpop.xlane.xlu0 %774
    %v776 = vrcp.pop %v775
    %v777 = vmul.f32 %v773, %v776
    %778 = vst [vmem:[%s6] sm:$0xff] %v777
    // Predicated region
    $region34: #{_lambda_.1} parent=1 // pred_check
      _
    $region35: #{_lambda_.1} parent=1 // pred_check_branch
      %780 = sbr.rel (0) target = $region37
    $region36: #{_lambda_.1} parent=1 // pred_region
      _
    $region37: #{_lambda_.1} parent=1 // pred_fallthru
      _
    // Predicated region
    $region38: #{_lambda_.1} parent=1 // pred_check
      _
    $region39: #{_lambda_.1} parent=1 // pred_check_branch
      %782 = sbr.rel (0) target = $region41
    $region40: #{_lambda_.1} parent=1 // pred_region
      _
    $region41: #{_lambda_.1} parent=1 // pred_fallthru
      _
    %783 = vsyncpa [#allocation3], 1
    %784 = vsyncpa [#allocation5], 1

</llo_original>
